<compile_context>
chip_gen: v7x
topology: tpu7x:2x2x1
jax: 0.10.0
libtpu: 0.0.40
codegen_flags: <defaults>
</compile_context>

<pallas_src>
import functools

import jax
import jax.numpy as jnp
from jax import lax
from jax.experimental import pallas as pl
from jax.experimental.pallas import tpu as pltpu


BN_EPS = 1e-5
LANE = 128      # vreg lane width  -> feature-dim padding granularity
SUBLANE = 8     # vreg sublane width -> batch-tile granularity


def _round_up(n, m):
    return ((n + m - 1) // m) * m


def _cdiv(a, b):
    return -(-a // b)


def _pad2(a, rows, cols):
    if a.shape == (rows, cols):
        return a
    return jnp.pad(a, ((0, rows - a.shape[0]), (0, cols - a.shape[1])))


def _vmem_capacity_bytes():
    try:
        return int(pltpu.get_tpu_info().vmem_capacity_bytes)
    except Exception:
        return 64 << 20   # conservative fallback (v7x-sized)


# ---------------------------------------------------------------------------
# Pass 1: exact whole-batch BatchNorm statistics (training mode, biased var).
# Shifted one-pass accumulation:  d = x - x[0]  (per feature), accumulate
# sum(d) and sum(d*d); padded (zero) batch rows contribute exactly -c and c^2
# per row and are removed analytically in the finalize step.
# Outputs: (1, Din_pad) mean and inv_std.
# ---------------------------------------------------------------------------
def _bn_stats_kernel(x0_ref, x_ref, mean_ref, istd_ref, *, n_rows, n_pad):
    i = pl.program_id(0)

    @pl.when(i == 0)
    def _():
        mean_ref[...] = jnp.zeros_like(mean_ref)
        istd_ref[...] = jnp.zeros_like(istd_ref)

    d = x_ref[...] - x0_ref[...]          # (tb, din) - (1, din) broadcast
    mean_ref[...] += jnp.sum(d, axis=0, keepdims=True)
    istd_ref[...] += jnp.sum(d * d, axis=0, keepdims=True)

    @pl.when(i == pl.num_programs(0) - 1)
    def _():
        c = x0_ref[...]
        # Remove contribution of the zero-padded rows (each contributes -c / c^2).
        s = mean_ref[...] + float(n_pad) * c
        q = istd_ref[...] - float(n_pad) * (c * c)
        inv_n = 1.0 / n_rows
        m_shift = s * inv_n                               # E[x - c]
        var = jnp.maximum(q * inv_n - m_shift * m_shift, 0.0)   # biased variance
        mean_ref[...] = m_shift + c                       # E[x]
        istd_ref[...] = lax.rsqrt(var + BN_EPS)


# ---------------------------------------------------------------------------
# Pass 2: the MLP itself (BatchNorm already folded into w1/b1 by the wrapper).
# Batch axis is "parallel"; weights/biases use constant index_maps so they stay
# VMEM-resident across the grid.  Weights arrive pre-cast to compute_dtype;
# accumulation and bias adds are f32.
# ---------------------------------------------------------------------------
def _mlp_kernel(x_ref, w1_ref, b1_ref, w2_ref, b2_ref, w3_ref, b3_ref,
                o_ref, *, compute_dtype):
    x = x_ref[...].astype(compute_dtype)

    h1 = jnp.dot(x, w1_ref[...], preferred_element_type=jnp.float32) + b1_ref[...]
    h1 = jnp.maximum(h1, 0.0)

    h2 = jnp.dot(h1.astype(compute_dtype), w2_ref[...],
                 preferred_element_type=jnp.float32) + b2_ref[...]
    h2 = jnp.maximum(h2, 0.0)

    # out_fn is identity (constrain_out=False default); output is lane-dense
    # because out_dim is padded to a multiple of 128.
    o_ref[...] = jnp.dot(h2.astype(compute_dtype), w3_ref[...],
                         preferred_element_type=jnp.float32) + b3_ref[...]


@functools.partial(jax.jit, static_argnames=("compute_dtype",))
def mlp_network_forward(x, params, *, compute_dtype=jnp.bfloat16):
    """x: (B, input_dim) f32.  params: transposed weights (in,out) + (1,out) biases.

    compute_dtype=jnp.bfloat16 (default) uses the native MXU fast path with f32
    accumulation; pass jnp.float32 for bit-faithful f32 matmuls.
    """
    B, din = x.shape
    dh = params["w1"].shape[1]
    dout = params["w3"].shape[1]

    din_p = _round_up(din, LANE)
    dh_p = _round_up(dh, LANE)
    dout_p = _round_up(dout, LANE)

    wbytes = jnp.dtype(compute_dtype).itemsize

    # ---- Generation-aware VMEM budget (v7x ~56 MiB, v5e/v6e ~100 MiB). ----
    cap = _vmem_capacity_bytes()
    budget = min(cap - (8 << 20), 100 << 20)

    # ---- Batch tiling: >=2 tiles when possible (v7x megacore), <=1024 rows, ----
    # ---- shrink until the (buffer-count-aware) VMEM estimate fits.          ----
    def mlp_vmem_estimate(t):
        return (
            2 * t * (din_p + dout_p) * 4                              # x / out tiles (x2 buf)
            + 2 * (din_p * dh_p + dh_p * dh_p + dh_p * dout_p) * wbytes  # weights (x2 buf)
            + 2 * (2 * dh_p + dout_p) * 4                             # biases (x2 buf)
            + 2 * t * dh_p * 4                                        # h1/h2 activations
            + (4 << 20)                                               # headroom / scratch
        )

    tb = min(1024, _round_up(max(_cdiv(B, 2), SUBLANE), SUBLANE))
    while mlp_vmem_estimate(tb) > budget and tb > SUBLANE:
        tb = max(SUBLANE, _round_up(tb // 2, SUBLANE))

    b_p = _round_up(B, tb)
    nb = b_p // tb
    n_pad_rows = b_p - B

    # ---- Pad x only when needed (skip the extra HBM round-trip if aligned). ----
    if (b_p == B) and (din_p == din):
        x_p = x
    else:
        x_p = _pad2(x, b_p, din_p)
    x0 = x_p[0:1, :]   # per-feature shift value for the stats pass (row 0 is real)

    const2 = lambda i: (0, 0)
    row_map = lambda i: (i, 0)

    # ---- Pass 1: BN statistics (reduction over batch tiles). ----
    stats_vmem = 2 * tb * din_p * 4 + 2 * din_p * 4 + 2 * 2 * din_p * 4 + (2 << 20)
    mean, inv_std = pl.pallas_call(
        functools.partial(_bn_stats_kernel, n_rows=float(B), n_pad=n_pad_rows),
        out_shape=(jax.ShapeDtypeStruct((1, din_p), jnp.float32),
                   jax.ShapeDtypeStruct((1, din_p), jnp.float32)),
        grid_spec=pltpu.PrefetchScalarGridSpec(
            num_scalar_prefetch=0,
            grid=(nb,),
            in_specs=[pl.BlockSpec((1, din_p), const2),      # x0 (shift, resident)
                      pl.BlockSpec((tb, din_p), row_map)],   # x tile (streamed)
            out_specs=(pl.BlockSpec((1, din_p), const2),
                       pl.BlockSpec((1, din_p), const2))),
        compiler_params=pltpu.CompilerParams(
            dimension_semantics=("arbitrary",),
            vmem_limit_bytes=int(min(stats_vmem, budget))),
    )(x0, x_p)

    # ---- Fold BatchNorm into fc1 (one-time (din_p, dh_p) elementwise op). ----
    w1_p = _pad2(params["w1"], din_p, dh_p)              # f32
    w1_eff = w1_p * jnp.transpose(inv_std)               # scale rows by inv_std
    b1_eff = _pad2(params["b1"], 1, dh_p) - mean @ w1_eff  # f32 bias
    # Pre-cast weights to compute_dtype once (halves DMA/VMEM when bf16).
    w1_c = w1_eff.astype(compute_dtype)
    w2_c = _pad2(params["w2"], dh_p, dh_p).astype(compute_dtype)
    w3_c = _pad2(params["w3"], dh_p, dout_p).astype(compute_dtype)
    b2_p = _pad2(params["b2"], 1, dh_p)
    b3_p = _pad2(params["b3"], 1, dout_p)

    # ---- Pass 2: MLP with resident weights; batch axis sharded across cores. ----
    out_p = pl.pallas_call(
        functools.partial(_mlp_kernel, compute_dtype=compute_dtype),
        out_shape=jax.ShapeDtypeStruct((b_p, dout_p), jnp.float32),
        grid_spec=pltpu.PrefetchScalarGridSpec(
            num_scalar_prefetch=0,
            grid=(nb,),
            in_specs=[pl.BlockSpec((tb, din_p), row_map),      # x tile (streamed)
                      pl.BlockSpec((din_p, dh_p), const2),     # w1 (resident)
                      pl.BlockSpec((1, dh_p), const2),         # b1
                      pl.BlockSpec((dh_p, dh_p), const2),      # w2
                      pl.BlockSpec((1, dh_p), const2),         # b2
                      pl.BlockSpec((dh_p, dout_p), const2),    # w3
                      pl.BlockSpec((1, dout_p), const2)],      # b3
            out_specs=pl.BlockSpec((tb, dout_p), row_map)),
        compiler_params=pltpu.CompilerParams(
            dimension_semantics=("parallel",),
            vmem_limit_bytes=int(min(mlp_vmem_estimate(tb), budget))),
    )(x_p, w1_c, b1_eff, w2_c, b2_p, w3_c, b3_p)

    return out_p[:B, :dout]


def init_params(key, input_dim, out_dim, hidden_dim):
    """Deterministic init mimicking nn.Linear default (U(-1/sqrt(fan_in), +))."""
    def linear(k, fan_in, fan_out):
        kw, kb = jax.random.split(k)
        bound = 1.0 / jnp.sqrt(fan_in)
        # stored transposed: (fan_in, fan_out) so the kernel computes x @ W + b
        w = jax.random.uniform(kw, (fan_in, fan_out), jnp.float32, -bound, bound)
        b = jax.random.uniform(kb, (1, fan_out), jnp.float32, -bound, bound)
        return w, b

    k1, k2, k3 = jax.random.split(key, 3)
    w1, b1 = linear(k1, input_dim, hidden_dim)
    w2, b2 = linear(k2, hidden_dim, hidden_dim)
    w3, b3 = linear(k3, hidden_dim, out_dim)
    return {"w1": w1, "b1": b1, "w2": w2, "b2": b2, "w3": w3, "b3": b3}


def _reference(x, p):
    mean = jnp.mean(x, axis=0, keepdims=True)
    var = jnp.mean((x - mean) ** 2, axis=0, keepdims=True)   # biased (training mode)
    xn = (x - mean) / jnp.sqrt(var + BN_EPS)
    h1 = jnp.maximum(xn @ p["w1"] + p["b1"], 0.0)
    h2 = jnp.maximum(h1 @ p["w2"] + p["b2"], 0.0)
    return h2 @ p["w3"] + p["b3"]


if __name__ == "__main__":
    key = jax.random.PRNGKey(0)
    k_x, k_p = jax.random.split(key)

    B, INPUT_DIM, HIDDEN_DIM, OUT_DIM = 8, 16, 32, 8

    x = jax.random.normal(k_x, (B, INPUT_DIM), jnp.float32)
    params = init_params(k_p, INPUT_DIM, OUT_DIM, HIDDEN_DIM)

    ref = _reference(x, params)

    # Exact f32 path.
    out_f32 = mlp_network_forward(x, params, compute_dtype=jnp.float32)
    jax.block_until_ready(out_f32)
    assert out_f32.shape == (B, OUT_DIM)
    assert jnp.allclose(out_f32, ref, atol=1e-4, rtol=1e-4), (
        float(jnp.max(jnp.abs(out_f32 - ref))))

    # Default bf16 MXU fast path (f32 accumulation); looser tolerance expected.
    out_bf16 = mlp_network_forward(x, params)
    jax.block_until_ready(out_bf16)
    assert out_bf16.shape == (B, OUT_DIM)
    assert jnp.allclose(out_bf16, ref, atol=5e-2, rtol=5e-2), (
        float(jnp.max(jnp.abs(out_bf16 - ref))))

    print("KERNEL_OK")
</pallas_src>

<mosaic_0001>
module attributes {stable_mosaic.version = 11 : i64} {
  func.func @_bn_stats_kernel(%arg0: i32, %arg1: memref<1x128xf32, #tpu.memory_space<vmem>>, %arg2: memref<8x128xf32, #tpu.memory_space<vmem>>, %arg3: memref<1x128xf32, #tpu.memory_space<vmem>>, %arg4: memref<1x128xf32, #tpu.memory_space<vmem>>) attributes {dimension_semantics = [#tpu.dimension_semantics<arbitrary>], iteration_bounds = array<i64: 1>, scalar_prefetch = 0 : i64, scratch_operands = 0 : i64, tpu.core_type = #tpu.core_type<tc>, window_params = [{pipeline_mode = #tpu.pipeline_mode<synchronous>, transform_indices = @transform_0, window_bounds = array<i64: 1, 128>}, {transform_indices = @transform_1, window_bounds = array<i64: 8, 128>}, {pipeline_mode = #tpu.pipeline_mode<synchronous>, transform_indices = @transform_2, window_bounds = array<i64: 1, 128>}, {pipeline_mode = #tpu.pipeline_mode<synchronous>, transform_indices = @transform_3, window_bounds = array<i64: 1, 128>}]} {
    %c0_i32 = arith.constant 0 : i32
    %0 = arith.cmpi eq, %arg0, %c0_i32 : i32
    %1 = arith.extui %0 : i1 to i32
    %c0_i32_0 = arith.constant 0 : i32
    %2 = arith.cmpi ne, %1, %c0_i32_0 : i32
    scf.if %2 {
      %cst_15 = arith.constant 0.000000e+00 : f32
      %21 = vector.broadcast %cst_15 : f32 to vector<1x128xf32>
      %c0_16 = arith.constant 0 : index
      %c0_17 = arith.constant 0 : index
      %22 = vector.load %arg3[%c0_16, %c0_17] : memref<1x128xf32, #tpu.memory_space<vmem>>, vector<1x128xf32>
      tpu.vector_store %arg3[%c0_16, %c0_17], %21 {strides = array<i32>} : memref<1x128xf32, #tpu.memory_space<vmem>>, vector<1x128xf32>,
      %cst_18 = arith.constant 0.000000e+00 : f32
      %23 = vector.broadcast %cst_18 : f32 to vector<1x128xf32>
      %c0_19 = arith.constant 0 : index
      %c0_20 = arith.constant 0 : index
      %24 = vector.load %arg4[%c0_19, %c0_20] : memref<1x128xf32, #tpu.memory_space<vmem>>, vector<1x128xf32>
      tpu.vector_store %arg4[%c0_19, %c0_20], %23 {strides = array<i32>} : memref<1x128xf32, #tpu.memory_space<vmem>>, vector<1x128xf32>,
    } else {
    }
    %c0 = arith.constant 0 : index
    %c0_1 = arith.constant 0 : index
    %3 = vector.load %arg2[%c0, %c0_1] : memref<8x128xf32, #tpu.memory_space<vmem>>, vector<8x128xf32>
    %c0_2 = arith.constant 0 : index
    %c0_3 = arith.constant 0 : index
    %4 = vector.load %arg1[%c0_2, %c0_3] : memref<1x128xf32, #tpu.memory_space<vmem>>, vector<1x128xf32>
    %5 = vector.broadcast %4 : vector<1x128xf32> to vector<8x128xf32>
    %6 = arith.subf %3, %5 : vector<8x128xf32>
    %c0_4 = arith.constant 0 : index
    %c0_5 = arith.constant 0 : index
    %7 = vector.load %arg3[%c0_4, %c0_5] : memref<1x128xf32, #tpu.memory_space<vmem>>, vector<1x128xf32>
    %cst = arith.constant dense<0.000000e+00> : vector<128xf32>
    %8 = vector.multi_reduction <add>, %6, %cst [0] : vector<8x128xf32> to vector<128xf32>
    %9 = vector.shape_cast %8 : vector<128xf32> to vector<1x128xf32>
    %10 = arith.addf %7, %9 : vector<1x128xf32>
    %c0_6 = arith.constant 0 : index
    %c0_7 = arith.constant 0 : index
    %11 = vector.load %arg3[%c0_6, %c0_7] : memref<1x128xf32, #tpu.memory_space<vmem>>, vector<1x128xf32>
    tpu.vector_store %arg3[%c0_6, %c0_7], %10 {strides = array<i32>} : memref<1x128xf32, #tpu.memory_space<vmem>>, vector<1x128xf32>,
    %c0_8 = arith.constant 0 : index
    %c0_9 = arith.constant 0 : index
    %12 = vector.load %arg4[%c0_8, %c0_9] : memref<1x128xf32, #tpu.memory_space<vmem>>, vector<1x128xf32>
    %13 = arith.mulf %6, %6 : vector<8x128xf32>
    %cst_10 = arith.constant dense<0.000000e+00> : vector<128xf32>
    %14 = vector.multi_reduction <add>, %13, %cst_10 [0] : vector<8x128xf32> to vector<128xf32>
    %15 = vector.shape_cast %14 : vector<128xf32> to vector<1x128xf32>
    %16 = arith.addf %12, %15 : vector<1x128xf32>
    %c0_11 = arith.constant 0 : index
    %c0_12 = arith.constant 0 : index
    %17 = vector.load %arg4[%c0_11, %c0_12] : memref<1x128xf32, #tpu.memory_space<vmem>>, vector<1x128xf32>
    tpu.vector_store %arg4[%c0_11, %c0_12], %16 {strides = array<i32>} : memref<1x128xf32, #tpu.memory_space<vmem>>, vector<1x128xf32>,
    %c0_i32_13 = arith.constant 0 : i32
    %18 = arith.cmpi eq, %arg0, %c0_i32_13 : i32
    %19 = arith.extui %18 : i1 to i32
    %c0_i32_14 = arith.constant 0 : i32
    %20 = arith.cmpi ne, %19, %c0_i32_14 : i32
    scf.if %20 {
      %c0_15 = arith.constant 0 : index
      %c0_16 = arith.constant 0 : index
      %21 = vector.load %arg1[%c0_15, %c0_16] : memref<1x128xf32, #tpu.memory_space<vmem>>, vector<1x128xf32>
      %c0_17 = arith.constant 0 : index
      %c0_18 = arith.constant 0 : index
      %22 = vector.load %arg3[%c0_17, %c0_18] : memref<1x128xf32, #tpu.memory_space<vmem>>, vector<1x128xf32>
      %cst_19 = arith.constant 0.000000e+00 : f32
      %23 = vector.broadcast %cst_19 : f32 to vector<1x128xf32>
      %24 = arith.mulf %23, %21 : vector<1x128xf32>
      %25 = arith.addf %22, %24 : vector<1x128xf32>
      %c0_20 = arith.constant 0 : index
      %c0_21 = arith.constant 0 : index
      %26 = vector.load %arg4[%c0_20, %c0_21] : memref<1x128xf32, #tpu.memory_space<vmem>>, vector<1x128xf32>
      %27 = arith.mulf %21, %21 : vector<1x128xf32>
      %cst_22 = arith.constant 0.000000e+00 : f32
      %28 = vector.broadcast %cst_22 : f32 to vector<1x128xf32>
      %29 = arith.mulf %28, %27 : vector<1x128xf32>
      %30 = arith.subf %26, %29 : vector<1x128xf32>
      %cst_23 = arith.constant 1.250000e-01 : f32
      %31 = vector.broadcast %cst_23 : f32 to vector<1x128xf32>
      %32 = arith.mulf %25, %31 : vector<1x128xf32>
      %cst_24 = arith.constant 1.250000e-01 : f32
      %33 = vector.broadcast %cst_24 : f32 to vector<1x128xf32>
      %34 = arith.mulf %30, %33 : vector<1x128xf32>
      %35 = arith.mulf %32, %32 : vector<1x128xf32>
      %36 = arith.subf %34, %35 : vector<1x128xf32>
      %cst_25 = arith.constant 0.000000e+00 : f32
      %37 = vector.broadcast %cst_25 : f32 to vector<1x128xf32>
      %38 = arith.maximumf %36, %37 : vector<1x128xf32>
      %39 = arith.addf %32, %21 : vector<1x128xf32>
      %c0_26 = arith.constant 0 : index
      %c0_27 = arith.constant 0 : index
      %40 = vector.load %arg3[%c0_26, %c0_27] : memref<1x128xf32, #tpu.memory_space<vmem>>, vector<1x128xf32>
      tpu.vector_store %arg3[%c0_26, %c0_27], %39 {strides = array<i32>} : memref<1x128xf32, #tpu.memory_space<vmem>>, vector<1x128xf32>,
      %cst_28 = arith.constant 9.99999974E-6 : f32
      %41 = vector.broadcast %cst_28 : f32 to vector<1x128xf32>
      %42 = arith.addf %38, %41 : vector<1x128xf32>
      %43 = math.rsqrt %42 : vector<1x128xf32>
      %c0_29 = arith.constant 0 : index
      %c0_30 = arith.constant 0 : index
      %44 = vector.load %arg4[%c0_29, %c0_30] : memref<1x128xf32, #tpu.memory_space<vmem>>, vector<1x128xf32>
      tpu.vector_store %arg4[%c0_29, %c0_30], %43 {strides = array<i32>} : memref<1x128xf32, #tpu.memory_space<vmem>>, vector<1x128xf32>,
    } else {
    }
    return
  }
  func.func @transform_0(%arg0: i32) -> (i32, i32) {
    %c0_i32 = arith.constant 0 : i32
    %c0_i32_0 = arith.constant 0 : i32
    %c0_i32_1 = arith.constant 0 : i32
    return %c0_i32, %c0_i32_0 : i32, i32
  }
  func.func @transform_1(%arg0: i32) -> (i32, i32) {
    %c0_i32 = arith.constant 0 : i32
    %c0_i32_0 = arith.constant 0 : i32
    return %arg0, %c0_i32 : i32, i32
  }
  func.func @transform_2(%arg0: i32) -> (i32, i32) {
    %c0_i32 = arith.constant 0 : i32
    %c0_i32_0 = arith.constant 0 : i32
    %c0_i32_1 = arith.constant 0 : i32
    return %c0_i32, %c0_i32_0 : i32, i32
  }
  func.func @transform_3(%arg0: i32) -> (i32, i32) {
    %c0_i32 = arith.constant 0 : i32
    %c0_i32_0 = arith.constant 0 : i32
    %c0_i32_1 = arith.constant 0 : i32
    return %c0_i32, %c0_i32_0 : i32, i32
  }
}

module attributes {stable_mosaic.version = 11 : i64} {
  func.func @_mlp_kernel(%arg0: i32, %arg1: memref<8x128xf32, #tpu.memory_space<vmem>>, %arg2: memref<128x128xf32, #tpu.memory_space<vmem>>, %arg3: memref<1x128xf32, #tpu.memory_space<vmem>>, %arg4: memref<128x128xf32, #tpu.memory_space<vmem>>, %arg5: memref<1x128xf32, #tpu.memory_space<vmem>>, %arg6: memref<128x128xf32, #tpu.memory_space<vmem>>, %arg7: memref<1x128xf32, #tpu.memory_space<vmem>>, %arg8: memref<8x128xf32, #tpu.memory_space<vmem>>) attributes {dimension_semantics = [#tpu.dimension_semantics<parallel>], iteration_bounds = array<i64: 1>, scalar_prefetch = 0 : i64, scratch_operands = 0 : i64, tpu.core_type = #tpu.core_type<tc>, window_params = [{transform_indices = @transform_0, window_bounds = array<i64: 8, 128>}, {pipeline_mode = #tpu.pipeline_mode<synchronous>, transform_indices = @transform_1, window_bounds = array<i64: 128, 128>}, {pipeline_mode = #tpu.pipeline_mode<synchronous>, transform_indices = @transform_2, window_bounds = array<i64: 1, 128>}, {pipeline_mode = #tpu.pipeline_mode<synchronous>, transform_indices = @transform_3, window_bounds = array<i64: 128, 128>}, {pipeline_mode = #tpu.pipeline_mode<synchronous>, transform_indices = @transform_4, window_bounds = array<i64: 1, 128>}, {pipeline_mode = #tpu.pipeline_mode<synchronous>, transform_indices = @transform_5, window_bounds = array<i64: 128, 128>}, {pipeline_mode = #tpu.pipeline_mode<synchronous>, transform_indices = @transform_6, window_bounds = array<i64: 1, 128>}, {transform_indices = @transform_7, window_bounds = array<i64: 8, 128>}]} {
    %c0 = arith.constant 0 : index
    %c0_0 = arith.constant 0 : index
    %0 = vector.load %arg1[%c0, %c0_0] : memref<8x128xf32, #tpu.memory_space<vmem>>, vector<8x128xf32>
    %c0_1 = arith.constant 0 : index
    %c0_2 = arith.constant 0 : index
    %1 = vector.load %arg2[%c0_1, %c0_2] : memref<128x128xf32, #tpu.memory_space<vmem>>, vector<128x128xf32>
    %cst = arith.constant dense<0.000000e+00> : vector<8x128xf32>
    %2 = tpu.matmul %0, %1, %cst {dimension_numbers = #tpu.dot_dimension_numbers<[1], [0], [0], [1], [0, 0, 1, 1], [], []>} : vector<8x128xf32>, vector<128x128xf32>, vector<8x128xf32> -> vector<8x128xf32>
    %c0_3 = arith.constant 0 : index
    %c0_4 = arith.constant 0 : index
    %3 = vector.load %arg3[%c0_3, %c0_4] : memref<1x128xf32, #tpu.memory_space<vmem>>, vector<1x128xf32>
    %4 = vector.broadcast %3 : vector<1x128xf32> to vector<8x128xf32>
    %5 = arith.addf %2, %4 : vector<8x128xf32>
    %cst_5 = arith.constant 0.000000e+00 : f32
    %6 = vector.broadcast %cst_5 : f32 to vector<8x128xf32>
    %7 = arith.maximumf %5, %6 : vector<8x128xf32>
    %c0_6 = arith.constant 0 : index
    %c0_7 = arith.constant 0 : index
    %8 = vector.load %arg4[%c0_6, %c0_7] : memref<128x128xf32, #tpu.memory_space<vmem>>, vector<128x128xf32>
    %cst_8 = arith.constant dense<0.000000e+00> : vector<8x128xf32>
    %9 = tpu.matmul %7, %8, %cst_8 {dimension_numbers = #tpu.dot_dimension_numbers<[1], [0], [0], [1], [0, 0, 1, 1], [], []>} : vector<8x128xf32>, vector<128x128xf32>, vector<8x128xf32> -> vector<8x128xf32>
    %c0_9 = arith.constant 0 : index
    %c0_10 = arith.constant 0 : index
    %10 = vector.load %arg5[%c0_9, %c0_10] : memref<1x128xf32, #tpu.memory_space<vmem>>, vector<1x128xf32>
    %11 = vector.broadcast %10 : vector<1x128xf32> to vector<8x128xf32>
    %12 = arith.addf %9, %11 : vector<8x128xf32>
    %cst_11 = arith.constant 0.000000e+00 : f32
    %13 = vector.broadcast %cst_11 : f32 to vector<8x128xf32>
    %14 = arith.maximumf %12, %13 : vector<8x128xf32>
    %c0_12 = arith.constant 0 : index
    %c0_13 = arith.constant 0 : index
    %15 = vector.load %arg6[%c0_12, %c0_13] : memref<128x128xf32, #tpu.memory_space<vmem>>, vector<128x128xf32>
    %cst_14 = arith.constant dense<0.000000e+00> : vector<8x128xf32>
    %16 = tpu.matmul %14, %15, %cst_14 {dimension_numbers = #tpu.dot_dimension_numbers<[1], [0], [0], [1], [0, 0, 1, 1], [], []>} : vector<8x128xf32>, vector<128x128xf32>, vector<8x128xf32> -> vector<8x128xf32>
    %c0_15 = arith.constant 0 : index
    %c0_16 = arith.constant 0 : index
    %17 = vector.load %arg7[%c0_15, %c0_16] : memref<1x128xf32, #tpu.memory_space<vmem>>, vector<1x128xf32>
    %18 = vector.broadcast %17 : vector<1x128xf32> to vector<8x128xf32>
    %19 = arith.addf %16, %18 : vector<8x128xf32>
    %c0_17 = arith.constant 0 : index
    %c0_18 = arith.constant 0 : index
    %20 = vector.load %arg8[%c0_17, %c0_18] : memref<8x128xf32, #tpu.memory_space<vmem>>, vector<8x128xf32>
    tpu.vector_store %arg8[%c0_17, %c0_18], %19 {strides = array<i32>} : memref<8x128xf32, #tpu.memory_space<vmem>>, vector<8x128xf32>,
    return
  }
  func.func @transform_0(%arg0: i32) -> (i32, i32) {
    %c0_i32 = arith.constant 0 : i32
    %c0_i32_0 = arith.constant 0 : i32
    return %arg0, %c0_i32 : i32, i32
  }
  func.func @transform_1(%arg0: i32) -> (i32, i32) {
    %c0_i32 = arith.constant 0 : i32
    %c0_i32_0 = arith.constant 0 : i32
    %c0_i32_1 = arith.constant 0 : i32
    return %c0_i32, %c0_i32_0 : i32, i32
  }
  func.func @transform_2(%arg0: i32) -> (i32, i32) {
    %c0_i32 = arith.constant 0 : i32
    %c0_i32_0 = arith.constant 0 : i32
    %c0_i32_1 = arith.constant 0 : i32
    return %c0_i32, %c0_i32_0 : i32, i32
  }
  func.func @transform_3(%arg0: i32) -> (i32, i32) {
    %c0_i32 = arith.constant 0 : i32
    %c0_i32_0 = arith.constant 0 : i32
    %c0_i32_1 = arith.constant 0 : i32
    return %c0_i32, %c0_i32_0 : i32, i32
  }
  func.func @transform_4(%arg0: i32) -> (i32, i32) {
    %c0_i32 = arith.constant 0 : i32
    %c0_i32_0 = arith.constant 0 : i32
    %c0_i32_1 = arith.constant 0 : i32
    return %c0_i32, %c0_i32_0 : i32, i32
  }
  func.func @transform_5(%arg0: i32) -> (i32, i32) {
    %c0_i32 = arith.constant 0 : i32
    %c0_i32_0 = arith.constant 0 : i32
    %c0_i32_1 = arith.constant 0 : i32
    return %c0_i32, %c0_i32_0 : i32, i32
  }
  func.func @transform_6(%arg0: i32) -> (i32, i32) {
    %c0_i32 = arith.constant 0 : i32
    %c0_i32_0 = arith.constant 0 : i32
    %c0_i32_1 = arith.constant 0 : i32
    return %c0_i32, %c0_i32_0 : i32, i32
  }
  func.func @transform_7(%arg0: i32) -> (i32, i32) {
    %c0_i32 = arith.constant 0 : i32
    %c0_i32_0 = arith.constant 0 : i32
    return %arg0, %c0_i32 : i32, i32
  }
}

</mosaic_0001>

<llo_original>
// kernel: mlp_network_forward.2
$region0: #{mlp_network_forward.2}
  #allocation0 [shape = 'u32[]', space=smem, size = 0x4, offset = 0x4, fixed_abs, tag = 'smem constant byte address 0x4 - core index']
  #allocation1 [shape = 'u32[144,128]{1,0:T(1,128)}', space=vmem, size = 0x12000, scoped, tag = 'internal scratch']
  %s0 = inlined_call_operand.vmem [shape: f32[1,128], index: 0, kind: input, shape index: {}]
  %s1 = inlined_call_operand.vmem [shape: f32[8,128], index: 1, kind: input, shape index: {}]
  %s2 = inlined_call_operand.vmem [shape: f32[1,128], index: 2, kind: output, shape index: {0}]
  %s3 = inlined_call_operand.vmem [shape: f32[1,128], index: 3, kind: output, shape index: {1}]
  %4 = xla_tuple %s2, %s3
  %s5 = sld [smem:[#allocation0]]
  $region34: #{mlp_network_forward.2} parent=0
    _
  %s7 = ssub.s32 1, %s5
  %s8 = scalar_select 0, %s7, %s5
  // Predicated region
  $region2: #{mlp_network_forward.2} parent=0 // pred_check
    _
  $region3: #{mlp_network_forward.2} parent=0 // pred_check_branch
    %10 = sbr.rel (0) target = $region5
  $region4: #{mlp_network_forward.2} parent=0 // pred_region
    _
  $region5: #{mlp_network_forward.2} parent=0 // pred_fallthru
    _
  // Predicated region
  $region6: #{mlp_network_forward.2} parent=0 // pred_check
    _
  $region7: #{mlp_network_forward.2} parent=0 // pred_check_branch
    %12 = sbr.rel (0) target = $region9
  $region8: #{mlp_network_forward.2} parent=0 // pred_region
    _
  $region9: #{mlp_network_forward.2} parent=0 // pred_fallthru
    _
  %p13 = scmp.eq.s32.totalorder 0, 0
  // Predicated region
  $region10: #{mlp_network_forward.2} parent=0 // pred_check
    %p14 = pneg %p13
  $region11: #{mlp_network_forward.2} parent=0 // pred_check_branch
    %16 = sbr.rel (%p14) target = $region13
  $region12: #{mlp_network_forward.2} parent=0 // pred_region
    %17 = vst [vmem:[%s2] sm:$0x1] 0.0
    %18 = vst [vmem:[%s3] sm:$0x1] 0.0
  $region13: #{mlp_network_forward.2} parent=0 // pred_fallthru
    _
  %v19 = vld [vmem:[%s1] sm:$0xff]
  %v20 = vld [vmem:[%s0] sm:$0x1]
  %v22 = vlaneseq
  %v23 = vshrl.u32 %v22, 7
  %v24 = vsub.s32 0, %v23
  %v25 = vrot.slane %v20, %v24
  %v27 = vsub.f32 %v19, %v25
  %v28 = vld [vmem:[%s2] sm:$0x1]
  %v29 = vrot.slane %v27, 4
  %v30 = vadd.f32 %v27, %v29
  %v31 = vrot.slane %v30, 2
  %v32 = vadd.f32 %v30, %v31
  %v33 = vrot.slane %v32, 1
  %v34 = vadd.f32 %v32, %v33
  %v35 = vadd.f32 %v28, %v34
  %36 = vst [vmem:[%s2] sm:$0x1] %v35
  %v37 = vld [vmem:[%s3] sm:$0x1]
  %v38 = vmul.f32 %v27, %v27
  %v39 = vrot.slane %v38, 4
  %v40 = vadd.f32 %v38, %v39
  %v41 = vrot.slane %v40, 2
  %v42 = vadd.f32 %v40, %v41
  %v43 = vrot.slane %v42, 1
  %v44 = vadd.f32 %v42, %v43
  %v45 = vadd.f32 %v37, %v44
  %46 = vst [vmem:[%s3] sm:$0x1] %v45
  // Predicated region
  $region14: #{mlp_network_forward.2} parent=0 // pred_check
    %p47 = pneg %p13
  $region15: #{mlp_network_forward.2} parent=0 // pred_check_branch
    %49 = sbr.rel (%p47) target = $region17
  $region16: #{mlp_network_forward.2} parent=0 // pred_region
    %v50 = vld [vmem:[%s0] sm:$0x1]
    %v51 = vld [vmem:[%s2] sm:$0x1]
    %v52 = vmul.f32 %v50, 0.0
    %v53 = vadd.f32 %v51, %v52
    %v54 = vld [vmem:[%s3] sm:$0x1]
    %v55 = vmul.f32 %v50, %v50
    %v56 = vmul.f32 %v55, 0.0
    %v57 = vsub.f32 %v54, %v56
    %v58 = vmul.f32 %v53, 0.125
    %v59 = vmul.f32 %v57, 0.125
    %v60 = vmul.f32 %v58, %v58
    %v61 = vsub.f32 %v59, %v60
    %v62 = vmax.f32 %v61, 0.0
    %v63 = vadd.f32 %v58, %v50
    %64 = vst [vmem:[%s2] sm:$0x1] %v63
    %v65 = vadd.f32 %v62, 1e-05
    %v66 = vrsqrt.pop %v65
    %67 = vst [vmem:[%s3] sm:$0x1] %v66
  $region17: #{mlp_network_forward.2} parent=0 // pred_fallthru
    _
  // Predicated region
  $region18: #{mlp_network_forward.2} parent=0 // pred_check
    _
  $region19: #{mlp_network_forward.2} parent=0 // pred_check_branch
    %69 = sbr.rel (0) target = $region21
  $region20: #{mlp_network_forward.2} parent=0 // pred_region
    _
  $region21: #{mlp_network_forward.2} parent=0 // pred_fallthru
    _
  // Predicated region
  $region22: #{mlp_network_forward.2} parent=0 // pred_check
    _
  $region23: #{mlp_network_forward.2} parent=0 // pred_check_branch
    %71 = sbr.rel (0) target = $region25
  $region24: #{mlp_network_forward.2} parent=0 // pred_region
    _
  $region25: #{mlp_network_forward.2} parent=0 // pred_fallthru
    _
  // Predicated region
  $region26: #{mlp_network_forward.2} parent=0 // pred_check
    _
  $region27: #{mlp_network_forward.2} parent=0 // pred_check_branch
    %73 = sbr.rel (0) target = $region29
  $region28: #{mlp_network_forward.2} parent=0 // pred_region
    _
  $region29: #{mlp_network_forward.2} parent=0 // pred_fallthru
    _
  // Predicated region
  $region30: #{mlp_network_forward.2} parent=0 // pred_check
    _
  $region31: #{mlp_network_forward.2} parent=0 // pred_check_branch
    %75 = sbr.rel (0) target = $region33
  $region32: #{mlp_network_forward.2} parent=0 // pred_region
    _
  $region33: #{mlp_network_forward.2} parent=0 // pred_fallthru
    _

// kernel: mlp_network_forward.3
$region0: #{mlp_network_forward.3}
  #allocation0 [shape = 'u32[]', space=smem, size = 0x4, offset = 0x4, fixed_abs, tag = 'smem constant byte address 0x4 - core index']
  #allocation1 [shape = 'u32[144,128]{1,0:T(1,128)}', space=vmem, size = 0x12000, scoped, tag = 'internal scratch']
  %s0 = inlined_call_operand.vmem [shape: f32[8,128], index: 0, kind: input, shape index: {}]
  %s1 = inlined_call_operand.vmem [shape: f32[128,128], index: 1, kind: input, shape index: {}]
  %s2 = inlined_call_operand.vmem [shape: f32[1,128], index: 2, kind: input, shape index: {}]
  %s3 = inlined_call_operand.vmem [shape: f32[128,128], index: 3, kind: input, shape index: {}]
  %s4 = inlined_call_operand.vmem [shape: f32[1,128], index: 4, kind: input, shape index: {}]
  %s5 = inlined_call_operand.vmem [shape: f32[128,128], index: 5, kind: input, shape index: {}]
  %s6 = inlined_call_operand.vmem [shape: f32[1,128], index: 6, kind: input, shape index: {}]
  %s7 = inlined_call_operand.hbm [shape: f32[8,128], index: 7, kind: output, shape index: {}]
  %s8 = sld [smem:[#allocation0]]
  $region38: #{mlp_network_forward.3} parent=0
    _
  %s10 = ssub.s32 1, %s8
  %s11 = scalar_select 0, %s10, %s8
  $region1: #{mlp_network_forward.3} parent=0
    #allocation2 [shape = 'u8[4096]{0}', space=vmem, size = 0x1000, scoped, tag = 'output window, operand 0, single buffered']
    #allocation3 [shape = 's32[1]{0}', space=sflag, size = 0x4, scoped, tag = 'scoped memory for mlp_network_forward.3']
    %12 = vsyncpa [#allocation3], 0
    // Predicated region
    $region2: #{mlp_network_forward.3} parent=1 // pred_check
      _
    $region3: #{mlp_network_forward.3} parent=1 // pred_check_branch
      %14 = sbr.rel (0) target = $region5
    $region4: #{mlp_network_forward.3} parent=1 // pred_region
      _
    $region5: #{mlp_network_forward.3} parent=1 // pred_fallthru
      _
    // Predicated region
    $region6: #{mlp_network_forward.3} parent=1 // pred_check
      _
    $region7: #{mlp_network_forward.3} parent=1 // pred_check_branch
      %16 = sbr.rel (0) target = $region9
    $region8: #{mlp_network_forward.3} parent=1 // pred_region
      _
    $region9: #{mlp_network_forward.3} parent=1 // pred_fallthru
      _
    // Predicated region
    $region10: #{mlp_network_forward.3} parent=1 // pred_check
      _
    $region11: #{mlp_network_forward.3} parent=1 // pred_check_branch
      %18 = sbr.rel (0) target = $region13
    $region12: #{mlp_network_forward.3} parent=1 // pred_region
      _
    $region13: #{mlp_network_forward.3} parent=1 // pred_fallthru
      _
    // Predicated region
    $region14: #{mlp_network_forward.3} parent=1 // pred_check
      _
    $region15: #{mlp_network_forward.3} parent=1 // pred_check_branch
      %20 = sbr.rel (0) target = $region17
    $region16: #{mlp_network_forward.3} parent=1 // pred_region
      _
    $region17: #{mlp_network_forward.3} parent=1 // pred_fallthru
      _
    // Predicated region
    $region18: #{mlp_network_forward.3} parent=1 // pred_check
      _
    $region19: #{mlp_network_forward.3} parent=1 // pred_check_branch
      %22 = sbr.rel (0) target = $region21
    $region20: #{mlp_network_forward.3} parent=1 // pred_region
      _
    $region21: #{mlp_network_forward.3} parent=1 // pred_fallthru
      _
    // Predicated region
    $region22: #{mlp_network_forward.3} parent=1 // pred_check
      _
    $region23: #{mlp_network_forward.3} parent=1 // pred_check_branch
      %24 = sbr.rel (0) target = $region25
    $region24: #{mlp_network_forward.3} parent=1 // pred_region
      _
    $region25: #{mlp_network_forward.3} parent=1 // pred_fallthru
      _
    // Predicated region
    $region26: #{mlp_network_forward.3} parent=1 // pred_check
      _
    $region27: #{mlp_network_forward.3} parent=1 // pred_check_branch
      %26 = sbr.rel (0) target = $region29
    $region28: #{mlp_network_forward.3} parent=1 // pred_region
      _
    $region29: #{mlp_network_forward.3} parent=1 // pred_fallthru
      _
    %v27 = vld [vmem:[%s0] sm:$0xff]
    %v28 = vld [vmem:[%s1] sm:$0xff]
    %v29 = vld [vmem:[%s1 + $0x8] sm:$0xff]
    %v30 = vld [vmem:[%s1 + $0x10] sm:$0xff]
    %v31 = vld [vmem:[%s1 + $0x18] sm:$0xff]
    %v32 = vld [vmem:[%s1 + $0x20] sm:$0xff]
    %v33 = vld [vmem:[%s1 + $0x28] sm:$0xff]
    %v34 = vld [vmem:[%s1 + $0x30] sm:$0xff]
    %v35 = vld [vmem:[%s1 + $0x38] sm:$0xff]
    %v36 = vld [vmem:[%s1 + $0x40] sm:$0xff]
    %v37 = vld [vmem:[%s1 + $0x48] sm:$0xff]
    %v38 = vld [vmem:[%s1 + $0x50] sm:$0xff]
    %v39 = vld [vmem:[%s1 + $0x58] sm:$0xff]
    %v40 = vld [vmem:[%s1 + $0x60] sm:$0xff]
    %v41 = vld [vmem:[%s1 + $0x68] sm:$0xff]
    %v42 = vld [vmem:[%s1 + $0x70] sm:$0xff]
    %v43 = vld [vmem:[%s1 + $0x78] sm:$0xff]
    %v44 = vld [vmem:[%s2] sm:$0x1]
    %v46 = vlaneseq
    %v47 = vshrl.u32 %v46, 7
    %v48 = vsub.s32 0, %v47
    %v49 = vrot.slane %v44, %v48
    %51 = vmatprep.subr.mxu0 0.0
    %52 = vmatpush1.msra.mxu0 %v28
    %53 = vmatprep.subr.mxu0 0.0
    %54 = vmatpush1.msra.mxu0 %v29
    %55 = vmatprep.subr.mxu0 0.0
    %56 = vmatpush1.msra.mxu0 %v30
    %57 = vmatprep.subr.mxu0 0.0
    %58 = vmatpush1.msra.mxu0 %v31
    %59 = vmatprep.subr.mxu0 0.0
    %60 = vmatpush1.msra.mxu0 %v32
    %61 = vmatprep.subr.mxu0 0.0
    %62 = vmatpush1.msra.mxu0 %v33
    %63 = vmatprep.subr.mxu0 0.0
    %64 = vmatpush1.msra.mxu0 %v34
    %65 = vmatprep.subr.mxu0 0.0
    %66 = vmatpush1.msra.mxu0 %v35
    %67 = vmatprep.subr.mxu0 0.0
    %68 = vmatpush1.msra.mxu0 %v36
    %69 = vmatprep.subr.mxu0 0.0
    %70 = vmatpush1.msra.mxu0 %v37
    %71 = vmatprep.subr.mxu0 0.0
    %72 = vmatpush1.msra.mxu0 %v38
    %73 = vmatprep.subr.mxu0 0.0
    %74 = vmatpush1.msra.mxu0 %v39
    %75 = vmatprep.subr.mxu0 0.0
    %76 = vmatpush1.msra.mxu0 %v40
    %77 = vmatprep.subr.mxu0 0.0
    %78 = vmatpush1.msra.mxu0 %v41
    %79 = vmatprep.subr.mxu0 0.0
    %80 = vmatpush1.msra.mxu0 %v42
    %81 = vmatprep.subr.mxu0 0.0
    %82 = vmatpush1.msra.mxu0 %v43
    %83 = vmatprep.subr.mxu0 0.0
    %84 = vmatpush1.msra.mxu0 0.0
    %85 = vmatprep.subr.mxu0 0.0
    %86 = vmatpush1.msra.mxu0 0.0
    %87 = vmatprep.subr.mxu0 0.0
    %88 = vmatpush1.msra.mxu0 0.0
    %89 = vmatprep.subr.mxu0 0.0
    %90 = vmatpush1.msra.mxu0 0.0
    %91 = vmatprep.subr.mxu0 0.0
    %92 = vmatpush1.msra.mxu0 0.0
    %93 = vmatprep.subr.mxu0 0.0
    %94 = vmatpush1.msra.mxu0 0.0
    %95 = vmatprep.subr.mxu0 0.0
    %96 = vmatpush1.msra.mxu0 0.0
    %97 = vmatprep.subr.mxu0 0.0
    %98 = vmatpush1.msra.mxu0 0.0
    %99 = vmatprep.subr.mxu0 0.0
    %100 = vmatpush1.msra.mxu0 0.0
    %101 = vmatprep.subr.mxu0 0.0
    %102 = vmatpush1.msra.mxu0 0.0
    %103 = vmatprep.subr.mxu0 0.0
    %104 = vmatpush1.msra.mxu0 0.0
    %105 = vmatprep.subr.mxu0 0.0
    %106 = vmatpush1.msra.mxu0 0.0
    %107 = vmatprep.subr.mxu0 0.0
    %108 = vmatpush1.msra.mxu0 0.0
    %109 = vmatprep.subr.mxu0 0.0
    %110 = vmatpush1.msra.mxu0 0.0
    %111 = vmatprep.subr.mxu0 0.0
    %112 = vmatpush1.msra.mxu0 0.0
    %113 = vmatprep.subr.mxu0 0.0
    %114 = vmatpush1.msra.mxu0 0.0
    %115 = vmatprep.mubr.f32.mxu0 0.0
    %116 = vmatmul.mubr.f32.gmra.mrb[0].mxu0 %v27
    %v117 = vpop.f32.mrb[0].mxu0
    %v118 = vadd.f32 %v49, %v117
    %v119 = vpop.f32.mrb[0].mxu0
    %120 = vdwg.mxu0
    %v121 = vmax.f32 %v118, 0.0
    %v122 = vld [vmem:[%s3] sm:$0xff]
    %v123 = vld [vmem:[%s3 + $0x8] sm:$0xff]
    %v124 = vld [vmem:[%s3 + $0x10] sm:$0xff]
    %v125 = vld [vmem:[%s3 + $0x18] sm:$0xff]
    %v126 = vld [vmem:[%s3 + $0x20] sm:$0xff]
    %v127 = vld [vmem:[%s3 + $0x28] sm:$0xff]
    %v128 = vld [vmem:[%s3 + $0x30] sm:$0xff]
    %v129 = vld [vmem:[%s3 + $0x38] sm:$0xff]
    %v130 = vld [vmem:[%s3 + $0x40] sm:$0xff]
    %v131 = vld [vmem:[%s3 + $0x48] sm:$0xff]
    %v132 = vld [vmem:[%s3 + $0x50] sm:$0xff]
    %v133 = vld [vmem:[%s3 + $0x58] sm:$0xff]
    %v134 = vld [vmem:[%s3 + $0x60] sm:$0xff]
    %v135 = vld [vmem:[%s3 + $0x68] sm:$0xff]
    %v136 = vld [vmem:[%s3 + $0x70] sm:$0xff]
    %v137 = vld [vmem:[%s3 + $0x78] sm:$0xff]
    %v138 = vld [vmem:[%s4] sm:$0x1]
    %v140 = vlaneseq
    %v141 = vshrl.u32 %v140, 7
    %v142 = vsub.s32 0, %v141
    %v143 = vrot.slane %v138, %v142
    %145 = vmatprep.subr.mxu0 0.0
    %146 = vmatpush1.msra.mxu0 %v122
    %147 = vmatprep.subr.mxu0 0.0
    %148 = vmatpush1.msra.mxu0 %v123
    %149 = vmatprep.subr.mxu0 0.0
    %150 = vmatpush1.msra.mxu0 %v124
    %151 = vmatprep.subr.mxu0 0.0
    %152 = vmatpush1.msra.mxu0 %v125
    %153 = vmatprep.subr.mxu0 0.0
    %154 = vmatpush1.msra.mxu0 %v126
    %155 = vmatprep.subr.mxu0 0.0
    %156 = vmatpush1.msra.mxu0 %v127
    %157 = vmatprep.subr.mxu0 0.0
    %158 = vmatpush1.msra.mxu0 %v128
    %159 = vmatprep.subr.mxu0 0.0
    %160 = vmatpush1.msra.mxu0 %v129
    %161 = vmatprep.subr.mxu0 0.0
    %162 = vmatpush1.msra.mxu0 %v130
    %163 = vmatprep.subr.mxu0 0.0
    %164 = vmatpush1.msra.mxu0 %v131
    %165 = vmatprep.subr.mxu0 0.0
    %166 = vmatpush1.msra.mxu0 %v132
    %167 = vmatprep.subr.mxu0 0.0
    %168 = vmatpush1.msra.mxu0 %v133
    %169 = vmatprep.subr.mxu0 0.0
    %170 = vmatpush1.msra.mxu0 %v134
    %171 = vmatprep.subr.mxu0 0.0
    %172 = vmatpush1.msra.mxu0 %v135
    %173 = vmatprep.subr.mxu0 0.0
    %174 = vmatpush1.msra.mxu0 %v136
    %175 = vmatprep.subr.mxu0 0.0
    %176 = vmatpush1.msra.mxu0 %v137
    %177 = vmatprep.subr.mxu0 0.0
    %178 = vmatpush1.msra.mxu0 0.0
    %179 = vmatprep.subr.mxu0 0.0
    %180 = vmatpush1.msra.mxu0 0.0
    %181 = vmatprep.subr.mxu0 0.0
    %182 = vmatpush1.msra.mxu0 0.0
    %183 = vmatprep.subr.mxu0 0.0
    %184 = vmatpush1.msra.mxu0 0.0
    %185 = vmatprep.subr.mxu0 0.0
    %186 = vmatpush1.msra.mxu0 0.0
    %187 = vmatprep.subr.mxu0 0.0
    %188 = vmatpush1.msra.mxu0 0.0
    %189 = vmatprep.subr.mxu0 0.0
    %190 = vmatpush1.msra.mxu0 0.0
    %191 = vmatprep.subr.mxu0 0.0
    %192 = vmatpush1.msra.mxu0 0.0
    %193 = vmatprep.subr.mxu0 0.0
    %194 = vmatpush1.msra.mxu0 0.0
    %195 = vmatprep.subr.mxu0 0.0
    %196 = vmatpush1.msra.mxu0 0.0
    %197 = vmatprep.subr.mxu0 0.0
    %198 = vmatpush1.msra.mxu0 0.0
    %199 = vmatprep.subr.mxu0 0.0
    %200 = vmatpush1.msra.mxu0 0.0
    %201 = vmatprep.subr.mxu0 0.0
    %202 = vmatpush1.msra.mxu0 0.0
    %203 = vmatprep.subr.mxu0 0.0
    %204 = vmatpush1.msra.mxu0 0.0
    %205 = vmatprep.subr.mxu0 0.0
    %206 = vmatpush1.msra.mxu0 0.0
    %207 = vmatprep.subr.mxu0 0.0
    %208 = vmatpush1.msra.mxu0 0.0
    %209 = vmatprep.mubr.f32.mxu0 0.0
    %210 = vmatmul.mubr.f32.gmra.mrb[0].mxu0 %v121
    %v211 = vpop.f32.mrb[0].mxu0
    %v212 = vadd.f32 %v143, %v211
    %v213 = vpop.f32.mrb[0].mxu0
    %214 = vdwg.mxu0
    %v215 = vmax.f32 %v212, 0.0
    %v216 = vld [vmem:[%s5] sm:$0xff]
    %v217 = vld [vmem:[%s5 + $0x8] sm:$0xff]
    %v218 = vld [vmem:[%s5 + $0x10] sm:$0xff]
    %v219 = vld [vmem:[%s5 + $0x18] sm:$0xff]
    %v220 = vld [vmem:[%s5 + $0x20] sm:$0xff]
    %v221 = vld [vmem:[%s5 + $0x28] sm:$0xff]
    %v222 = vld [vmem:[%s5 + $0x30] sm:$0xff]
    %v223 = vld [vmem:[%s5 + $0x38] sm:$0xff]
    %v224 = vld [vmem:[%s5 + $0x40] sm:$0xff]
    %v225 = vld [vmem:[%s5 + $0x48] sm:$0xff]
    %v226 = vld [vmem:[%s5 + $0x50] sm:$0xff]
    %v227 = vld [vmem:[%s5 + $0x58] sm:$0xff]
    %v228 = vld [vmem:[%s5 + $0x60] sm:$0xff]
    %v229 = vld [vmem:[%s5 + $0x68] sm:$0xff]
    %v230 = vld [vmem:[%s5 + $0x70] sm:$0xff]
    %v231 = vld [vmem:[%s5 + $0x78] sm:$0xff]
    %v232 = vld [vmem:[%s6] sm:$0x1]
    %v234 = vlaneseq
    %v235 = vshrl.u32 %v234, 7
    %v236 = vsub.s32 0, %v235
    %v237 = vrot.slane %v232, %v236
    %239 = vmatprep.subr.mxu0 0.0
    %240 = vmatpush1.msra.mxu0 %v216
    %241 = vmatprep.subr.mxu0 0.0
    %242 = vmatpush1.msra.mxu0 %v217
    %243 = vmatprep.subr.mxu0 0.0
    %244 = vmatpush1.msra.mxu0 %v218
    %245 = vmatprep.subr.mxu0 0.0
    %246 = vmatpush1.msra.mxu0 %v219
    %247 = vmatprep.subr.mxu0 0.0
    %248 = vmatpush1.msra.mxu0 %v220
    %249 = vmatprep.subr.mxu0 0.0
    %250 = vmatpush1.msra.mxu0 %v221
    %251 = vmatprep.subr.mxu0 0.0
    %252 = vmatpush1.msra.mxu0 %v222
    %253 = vmatprep.subr.mxu0 0.0
    %254 = vmatpush1.msra.mxu0 %v223
    %255 = vmatprep.subr.mxu0 0.0
    %256 = vmatpush1.msra.mxu0 %v224
    %257 = vmatprep.subr.mxu0 0.0
    %258 = vmatpush1.msra.mxu0 %v225
    %259 = vmatprep.subr.mxu0 0.0
    %260 = vmatpush1.msra.mxu0 %v226
    %261 = vmatprep.subr.mxu0 0.0
    %262 = vmatpush1.msra.mxu0 %v227
    %263 = vmatprep.subr.mxu0 0.0
    %264 = vmatpush1.msra.mxu0 %v228
    %265 = vmatprep.subr.mxu0 0.0
    %266 = vmatpush1.msra.mxu0 %v229
    %267 = vmatprep.subr.mxu0 0.0
    %268 = vmatpush1.msra.mxu0 %v230
    %269 = vmatprep.subr.mxu0 0.0
    %270 = vmatpush1.msra.mxu0 %v231
    %271 = vmatprep.subr.mxu0 0.0
    %272 = vmatpush1.msra.mxu0 0.0
    %273 = vmatprep.subr.mxu0 0.0
    %274 = vmatpush1.msra.mxu0 0.0
    %275 = vmatprep.subr.mxu0 0.0
    %276 = vmatpush1.msra.mxu0 0.0
    %277 = vmatprep.subr.mxu0 0.0
    %278 = vmatpush1.msra.mxu0 0.0
    %279 = vmatprep.subr.mxu0 0.0
    %280 = vmatpush1.msra.mxu0 0.0
    %281 = vmatprep.subr.mxu0 0.0
    %282 = vmatpush1.msra.mxu0 0.0
    %283 = vmatprep.subr.mxu0 0.0
    %284 = vmatpush1.msra.mxu0 0.0
    %285 = vmatprep.subr.mxu0 0.0
    %286 = vmatpush1.msra.mxu0 0.0
    %287 = vmatprep.subr.mxu0 0.0
    %288 = vmatpush1.msra.mxu0 0.0
    %289 = vmatprep.subr.mxu0 0.0
    %290 = vmatpush1.msra.mxu0 0.0
    %291 = vmatprep.subr.mxu0 0.0
    %292 = vmatpush1.msra.mxu0 0.0
    %293 = vmatprep.subr.mxu0 0.0
    %294 = vmatpush1.msra.mxu0 0.0
    %295 = vmatprep.subr.mxu0 0.0
    %296 = vmatpush1.msra.mxu0 0.0
    %297 = vmatprep.subr.mxu0 0.0
    %298 = vmatpush1.msra.mxu0 0.0
    %299 = vmatprep.subr.mxu0 0.0
    %300 = vmatpush1.msra.mxu0 0.0
    %301 = vmatprep.subr.mxu0 0.0
    %302 = vmatpush1.msra.mxu0 0.0
    %303 = vmatprep.mubr.f32.mxu0 0.0
    %304 = vmatmul.mubr.f32.gmra.mrb[0].mxu0 %v215
    %v305 = vpop.f32.mrb[0].mxu0
    %v306 = vadd.f32 %v237, %v305
    %v307 = vpop.f32.mrb[0].mxu0
    %308 = vdwg.mxu0
    %309 = vst [vmem:[#allocation2] sm:$0xff] %v306
    // Predicated region
    $region30: #{mlp_network_forward.3} parent=1 // pred_check
      _
    $region31: #{mlp_network_forward.3} parent=1 // pred_check_branch
      %311 = sbr.rel (0) target = $region33
    $region32: #{mlp_network_forward.3} parent=1 // pred_region
      %s313 = ssub.s32 128, 128
      %314 = vsyncadd [#allocation3], %s313
      %s316 = sshll.u32 [#allocation2], 4
      %s317 = int_to_ptr.vmem [resolvable:$true] %s316
      %319 = dma.vmem_to_hbm [thread:$0]  %s317, 128, %s7, [#allocation3]
    $region33: #{mlp_network_forward.3} parent=1 // pred_fallthru
      _
    // Predicated region
    $region34: #{mlp_network_forward.3} parent=1 // pred_check
      _
    $region35: #{mlp_network_forward.3} parent=1 // pred_check_branch
      %321 = sbr.rel (0) target = $region37
    $region36: #{mlp_network_forward.3} parent=1 // pred_region
      %322 = dma.done [#allocation3], 128
    $region37: #{mlp_network_forward.3} parent=1 // pred_fallthru
      _
    %323 = vsyncpa [#allocation3], 1

</llo_original>
